<compile_context>
chip_gen: v6e
topology: v6e:2x2x1
jax: 0.10.0
libtpu: 0.0.40
codegen_flags: <defaults>
</compile_context>

<pallas_src>
import functools

import jax
import jax.numpy as jnp
from jax.experimental import pallas as pl
from jax.experimental.pallas import tpu as pltpu

LANE = 128
LN_EPS = 1e-5


def _round_up(x, m):
    return ((x + m - 1) // m) * m


def _pad2(a, rows, cols, dtype=None):
    out = jnp.pad(a, ((0, rows - a.shape[0]), (0, cols - a.shape[1])))
    return out.astype(dtype) if dtype is not None else out


# ----------------------------- fused kernel ----------------------------------
def _mlp_fused_kernel(*refs, layer_meta, eps):
    """refs = [x_ref, (w, b[, gamma, beta]) per layer ..., o_ref].

    layer_meta: tuple of (has_norm, relu_flag, d_real, d_pad) per layer.
    Invariant maintained across layers: columns >= d_real of every
    intermediate are exactly 0 (zero-padded weights/bias, zero-padded
    gamma/beta, ReLU(0)=0), so LN sums over the padded width are exact.
    """
    x_ref = refs[0]
    o_ref = refs[-1]
    params = refs[1:-1]

    h = x_ref[...]
    p = 0
    for (has_norm, relu_flag, d_real, d_pad) in layer_meta:
        w = params[p][...]        # bf16, resident in VMEM (stored bf16 at init)
        b = params[p + 1][...]    # f32
        p += 2
        # bf16 MXU inputs, f32 accumulation.
        y = jnp.dot(h.astype(jnp.bfloat16), w,
                    preferred_element_type=jnp.float32)
        y = y + b
        if has_norm:
            g = params[p][...]
            bt = params[p + 1][...]
            p += 2
            inv_n = 1.0 / float(d_real)
            # Padded columns of y are exactly 0 -> both sums over the padded
            # width equal the sums over the real width.
            s1 = jnp.sum(y, axis=-1, keepdims=True)
            s2 = jnp.sum(y * y, axis=-1, keepdims=True)
            mean = s1 * inv_n
            var = jnp.maximum(s2 * inv_n - mean * mean, 0.0)
            y = (y - mean) * jax.lax.rsqrt(var + eps)
            # gamma/beta padded with zeros -> padded columns return to 0.
            y = y * g + bt
        if relu_flag:
            y = jnp.maximum(y, 0.0)
        h = y

    o_ref[...] = h.astype(o_ref.dtype)


# ----------------------------- tiling heuristics ------------------------------
def _tpu_generation():
    """Best-effort (generation_tag, tensorcores_per_chip)."""
    try:
        kind = jax.devices()[0].device_kind.lower()
    except Exception:
        return "unknown", 1
    if "7" in kind:
        return "v7x", 2           # 2 TensorCores per chip
    if "v5 lite" in kind or "v5e" in kind or "v5lite" in kind:
        return "v5e", 1
    return "v6e", 1


def _choose_tb(B, num_tc, max_tb):
    """Batch tile size.

    1-TC chips (v5e/v6e): single grid program when B fits (grid is a serial
    loop -> extra programs are pure overhead).  2-TC chips (v7x): even 2-way
    split so both cores get balanced work.
    """
    if B <= max_tb:
        if num_tc >= 2 and B >= 16:
            return _round_up(pl.cdiv(B, 2), 8)   # 2 balanced programs
        return B                                  # single program
    tb = max_tb
    if num_tc >= 2:
        nprog = pl.cdiv(B, tb)
        if nprog > 1 and nprog % 2 == 1:
            # Avoid an odd program count (one core idle on the tail).
            tb = min(max_tb, _round_up(pl.cdiv(B, nprog + 1), 8))
    return tb


# ----------------------------- wrapper ---------------------------------------
def mlp_forward(x, padded_params, layer_meta, *, eps=LN_EPS, slice_output=True):
    B, d_in = x.shape
    d_in_pad = padded_params[0][0].shape[0]
    d_out_pad = layer_meta[-1][3]
    d_out_real = layer_meta[-1][2]

    # For large batches the kernel is activation-bandwidth bound with resident
    # weights: move x over HBM as bf16 (the kernel casts to bf16 anyway).
    if B >= 512 and x.dtype == jnp.float32:
        x = x.astype(jnp.bfloat16)
    if d_in_pad != d_in:
        x = jnp.pad(x, ((0, 0), (0, d_in_pad - d_in)))

    gen, num_tc = _tpu_generation()
    max_tb = 128 if gen == "v5e" else 256
    tb = _choose_tb(B, num_tc, max_tb)
    grid = (pl.cdiv(B, tb),)

    # Parameters: single resident VMEM copy (no pipelining / double-buffer).
    param_spec = pl.BlockSpec(memory_space=pltpu.MemorySpace.VMEM)
    in_specs = [pl.BlockSpec((tb, d_in_pad), lambda i: (i, 0))]
    args = [x]
    for (w, b, g, bt), (has_norm, _, _, _) in zip(padded_params, layer_meta):
        in_specs += [param_spec, param_spec]
        args += [w, b]
        if has_norm:
            in_specs += [param_spec, param_spec]
            args += [g, bt]

    out_specs = pl.BlockSpec((tb, d_out_pad), lambda i: (i, 0))
    out_shape = jax.ShapeDtypeStruct((B, d_out_pad), jnp.float32)

    param_bytes = sum(int(a.size) * a.dtype.itemsize for a in args[1:])
    # Double-buffered activation tiles + resident params + headroom;
    # clamp to v7x's 64 MiB physical VMEM.
    act_bytes = 2 * tb * d_in_pad * x.dtype.itemsize + 2 * tb * d_out_pad * 4
    vmem_limit = int(min(64 << 20,
                         max(16 << 20,
                             (act_bytes + param_bytes) * 3 // 2 + (4 << 20))))

    flops = sum(2 * B * w.shape[0] * w.shape[1] for (w, _, _, _) in padded_params)
    bytes_accessed = (int(x.size) * x.dtype.itemsize
                      + B * d_out_pad * 4 + param_bytes)
    transcendentals = B * sum(1 for m in layer_meta if m[0])

    kern = functools.partial(_mlp_fused_kernel,
                             layer_meta=tuple(layer_meta), eps=eps)
    y = pl.pallas_call(
        kern,
        grid=grid,
        in_specs=in_specs,
        out_specs=out_specs,
        out_shape=out_shape,
        compiler_params=pltpu.CompilerParams(
            dimension_semantics=("parallel",),
            vmem_limit_bytes=vmem_limit),
        cost_estimate=pl.CostEstimate(
            flops=flops, transcendentals=transcendentals,
            bytes_accessed=bytes_accessed),
    )(*args)

    if slice_output and d_out_real != d_out_pad:
        y = y[:, :d_out_real]
    return y


# ----------------------------- MLP module ------------------------------------
class MLP:
    """JAX/Pallas port of the PyTorch MLP baseclass (eval-mode forward)."""

    def __init__(self, key, inp_dim, out_dim, num_layers=1, relu=True,
                 bias=True, dropout=False, norm=False, layers=()):
        layers = list(layers)
        self._ref_layers = []      # unpadded f32 (w, b, gamma, beta, relu_flag)
        self._padded_params = []   # lane-padded (w bf16, b, gamma, beta)
        self._layer_meta = []      # (has_norm, relu_flag, d_real, d_pad)
        incoming = inp_dim

        def init_linear(key, din, dout):
            kw, kb = jax.random.split(key)
            bound = 1.0 / (din ** 0.5)  # torch.nn.Linear default init range
            w = jax.random.uniform(kw, (din, dout), jnp.float32, -bound, bound)
            if bias:
                bvec = jax.random.uniform(kb, (1, dout), jnp.float32,
                                          -bound, bound)
            else:
                bvec = jnp.zeros((1, dout), jnp.float32)
            return w, bvec

        def add_layer(key, din, dout, use_norm, relu_flag):
            w, bvec = init_linear(key, din, dout)
            gamma = jnp.ones((1, dout), jnp.float32) if use_norm else None
            beta = jnp.zeros((1, dout), jnp.float32) if use_norm else None
            self._ref_layers.append((w, bvec, gamma, beta, relu_flag))

            din_p = _round_up(din, LANE)
            dout_p = _round_up(dout, LANE)
            # Store weights bf16 (MXU input dtype) -> half the DMA/VMEM, no
            # per-program cast in the kernel.
            w_p = _pad2(w, din_p, dout_p, jnp.bfloat16)
            b_p = _pad2(bvec, 1, dout_p)
            if use_norm:
                # Pad gamma/beta with ZEROS so padded columns stay 0 after LN
                # (load-bearing invariant for the LN-over-padded-width math).
                g_p = _pad2(gamma, 1, dout_p)
                bt_p = _pad2(beta, 1, dout_p)
            else:
                g_p, bt_p = None, None
            self._padded_params.append((w_p, b_p, g_p, bt_p))
            self._layer_meta.append((use_norm, relu_flag, dout, dout_p))

        for _ in range(num_layers - 1):
            outgoing = incoming if len(layers) == 0 else layers.pop(0)
            key, sub = jax.random.split(key)
            add_layer(sub, incoming, outgoing, norm, True)  # hidden: ReLU
            incoming = outgoing

        key, sub = jax.random.split(key)
        add_layer(sub, incoming, out_dim, False, bool(relu))

    def __call__(self, x):
        return mlp_forward(x, self._padded_params, self._layer_meta)

    def reference(self, x):
        """Pure-JAX reference of the same forward (bf16 matmul inputs to
        match the kernel's MXU numerics)."""
        for (w, b, gamma, beta, relu_flag) in self._ref_layers:
            y = jnp.dot(x.astype(jnp.bfloat16), w.astype(jnp.bfloat16),
                        preferred_element_type=jnp.float32) + b
            if gamma is not None:
                mean = jnp.mean(y, axis=-1, keepdims=True)
                var = jnp.mean(jnp.square(y - mean), axis=-1, keepdims=True)
                y = (y - mean) * jax.lax.rsqrt(var + LN_EPS) * gamma + beta
            if relu_flag:
                y = jnp.maximum(y, 0.0)
            x = y
        return x


# ----------------------------- main -------------------------------------------
if __name__ == "__main__":
    key = jax.random.PRNGKey(0)
    key, kx, kp = jax.random.split(key, 3)

    B, INP, OUT = 16, 32, 16
    x = jax.random.normal(kx, (B, INP), jnp.float32)

    # MLP(inp_dim=32, out_dim=16, num_layers=3, relu=True, bias=True,
    #     norm=True, layers=[64, 32])
    #   -> Linear+LN+ReLU, Linear+LN+ReLU, Linear+ReLU   (Dropout: eval identity)
    mlp = MLP(kp, INP, OUT, num_layers=3, relu=True, bias=True,
              dropout=False, norm=True, layers=[64, 32])

    out = mlp(x)
    out = jax.block_until_ready(out)

    ref = mlp.reference(x)
    assert out.shape == (B, OUT)
    assert jnp.allclose(out, ref, atol=1e-3, rtol=1e-3), "mismatch vs reference"

    print("KERNEL_OK")
</pallas_src>

<mosaic_0001>
module attributes {stable_mosaic.version = 11 : i64} {
  func.func @_mlp_fused_kernel(%arg0: i32, %arg1: memref<16x128xf32, #tpu.memory_space<vmem>>, %arg2: memref<128x128xbf16, #tpu.memory_space<vmem>>, %arg3: memref<1x128xf32, #tpu.memory_space<vmem>>, %arg4: memref<1x128xf32, #tpu.memory_space<vmem>>, %arg5: memref<1x128xf32, #tpu.memory_space<vmem>>, %arg6: memref<128x128xbf16, #tpu.memory_space<vmem>>, %arg7: memref<1x128xf32, #tpu.memory_space<vmem>>, %arg8: memref<1x128xf32, #tpu.memory_space<vmem>>, %arg9: memref<1x128xf32, #tpu.memory_space<vmem>>, %arg10: memref<128x128xbf16, #tpu.memory_space<vmem>>, %arg11: memref<1x128xf32, #tpu.memory_space<vmem>>, %arg12: memref<16x128xf32, #tpu.memory_space<vmem>>) attributes {dimension_semantics = [#tpu.dimension_semantics<parallel>], iteration_bounds = array<i64: 1>, scalar_prefetch = 0 : i64, scratch_operands = 0 : i64, tpu.core_type = #tpu.core_type<tc>, window_params = [{transform_indices = @transform_0, window_bounds = array<i64: 16, 128>}, {pipeline_mode = #tpu.pipeline_mode<synchronous>, transform_indices = @transform_1, window_bounds = array<i64: 128, 128>}, {pipeline_mode = #tpu.pipeline_mode<synchronous>, transform_indices = @transform_2, window_bounds = array<i64: 1, 128>}, {pipeline_mode = #tpu.pipeline_mode<synchronous>, transform_indices = @transform_3, window_bounds = array<i64: 1, 128>}, {pipeline_mode = #tpu.pipeline_mode<synchronous>, transform_indices = @transform_4, window_bounds = array<i64: 1, 128>}, {pipeline_mode = #tpu.pipeline_mode<synchronous>, transform_indices = @transform_5, window_bounds = array<i64: 128, 128>}, {pipeline_mode = #tpu.pipeline_mode<synchronous>, transform_indices = @transform_6, window_bounds = array<i64: 1, 128>}, {pipeline_mode = #tpu.pipeline_mode<synchronous>, transform_indices = @transform_7, window_bounds = array<i64: 1, 128>}, {pipeline_mode = #tpu.pipeline_mode<synchronous>, transform_indices = @transform_8, window_bounds = array<i64: 1, 128>}, {pipeline_mode = #tpu.pipeline_mode<synchronous>, transform_indices = @transform_9, window_bounds = array<i64: 128, 128>}, {pipeline_mode = #tpu.pipeline_mode<synchronous>, transform_indices = @transform_10, window_bounds = array<i64: 1, 128>}, {transform_indices = @transform_11, window_bounds = array<i64: 16, 128>}]} {
    %c0 = arith.constant 0 : index
    %c0_0 = arith.constant 0 : index
    %0 = vector.load %arg1[%c0, %c0_0] : memref<16x128xf32, #tpu.memory_space<vmem>>, vector<16x128xf32>
    %c0_1 = arith.constant 0 : index
    %c0_2 = arith.constant 0 : index
    %1 = vector.load %arg2[%c0_1, %c0_2] : memref<128x128xbf16, #tpu.memory_space<vmem>>, vector<128x128xbf16>
    %c0_3 = arith.constant 0 : index
    %c0_4 = arith.constant 0 : index
    %2 = vector.load %arg3[%c0_3, %c0_4] : memref<1x128xf32, #tpu.memory_space<vmem>>, vector<1x128xf32>
    %3 = arith.truncf %0 : vector<16x128xf32> to vector<16x128xbf16>
    %cst = arith.constant dense<0.000000e+00> : vector<16x128xf32>
    %4 = tpu.matmul %3, %1, %cst {dimension_numbers = #tpu.dot_dimension_numbers<[1], [0], [0], [1], [0, 0, 1, 1], [], []>} : vector<16x128xbf16>, vector<128x128xbf16>, vector<16x128xf32> -> vector<16x128xf32>
    %5 = vector.broadcast %2 : vector<1x128xf32> to vector<16x128xf32>
    %6 = arith.addf %4, %5 : vector<16x128xf32>
    %c0_5 = arith.constant 0 : index
    %c0_6 = arith.constant 0 : index
    %7 = vector.load %arg4[%c0_5, %c0_6] : memref<1x128xf32, #tpu.memory_space<vmem>>, vector<1x128xf32>
    %c0_7 = arith.constant 0 : index
    %c0_8 = arith.constant 0 : index
    %8 = vector.load %arg5[%c0_7, %c0_8] : memref<1x128xf32, #tpu.memory_space<vmem>>, vector<1x128xf32>
    %cst_9 = arith.constant dense<0.000000e+00> : vector<16xf32>
    %9 = vector.multi_reduction <add>, %6, %cst_9 [1] : vector<16x128xf32> to vector<16xf32>
    %10 = vector.shape_cast %9 : vector<16xf32> to vector<16x1xf32>
    %11 = arith.mulf %6, %6 : vector<16x128xf32>
    %cst_10 = arith.constant dense<0.000000e+00> : vector<16xf32>
    %12 = vector.multi_reduction <add>, %11, %cst_10 [1] : vector<16x128xf32> to vector<16xf32>
    %13 = vector.shape_cast %12 : vector<16xf32> to vector<16x1xf32>
    %cst_11 = arith.constant 1.562500e-02 : f32
    %14 = vector.broadcast %cst_11 : f32 to vector<16x1xf32>
    %15 = arith.mulf %10, %14 : vector<16x1xf32>
    %cst_12 = arith.constant 1.562500e-02 : f32
    %16 = vector.broadcast %cst_12 : f32 to vector<16x1xf32>
    %17 = arith.mulf %13, %16 : vector<16x1xf32>
    %18 = arith.mulf %15, %15 : vector<16x1xf32>
    %19 = arith.subf %17, %18 : vector<16x1xf32>
    %cst_13 = arith.constant 0.000000e+00 : f32
    %20 = vector.broadcast %cst_13 : f32 to vector<16x1xf32>
    %21 = arith.maximumf %19, %20 : vector<16x1xf32>
    %22 = vector.broadcast %15 : vector<16x1xf32> to vector<16x128xf32>
    %23 = arith.subf %6, %22 : vector<16x128xf32>
    %cst_14 = arith.constant 9.99999974E-6 : f32
    %24 = vector.broadcast %cst_14 : f32 to vector<16x1xf32>
    %25 = arith.addf %21, %24 : vector<16x1xf32>
    %26 = math.rsqrt %25 : vector<16x1xf32>
    %27 = vector.broadcast %26 : vector<16x1xf32> to vector<16x128xf32>
    %28 = arith.mulf %23, %27 : vector<16x128xf32>
    %29 = vector.broadcast %7 : vector<1x128xf32> to vector<16x128xf32>
    %30 = arith.mulf %28, %29 : vector<16x128xf32>
    %31 = vector.broadcast %8 : vector<1x128xf32> to vector<16x128xf32>
    %32 = arith.addf %30, %31 : vector<16x128xf32>
    %cst_15 = arith.constant 0.000000e+00 : f32
    %33 = vector.broadcast %cst_15 : f32 to vector<16x128xf32>
    %34 = arith.maximumf %32, %33 : vector<16x128xf32>
    %c0_16 = arith.constant 0 : index
    %c0_17 = arith.constant 0 : index
    %35 = vector.load %arg6[%c0_16, %c0_17] : memref<128x128xbf16, #tpu.memory_space<vmem>>, vector<128x128xbf16>
    %c0_18 = arith.constant 0 : index
    %c0_19 = arith.constant 0 : index
    %36 = vector.load %arg7[%c0_18, %c0_19] : memref<1x128xf32, #tpu.memory_space<vmem>>, vector<1x128xf32>
    %37 = arith.truncf %34 : vector<16x128xf32> to vector<16x128xbf16>
    %cst_20 = arith.constant dense<0.000000e+00> : vector<16x128xf32>
    %38 = tpu.matmul %37, %35, %cst_20 {dimension_numbers = #tpu.dot_dimension_numbers<[1], [0], [0], [1], [0, 0, 1, 1], [], []>} : vector<16x128xbf16>, vector<128x128xbf16>, vector<16x128xf32> -> vector<16x128xf32>
    %39 = vector.broadcast %36 : vector<1x128xf32> to vector<16x128xf32>
    %40 = arith.addf %38, %39 : vector<16x128xf32>
    %c0_21 = arith.constant 0 : index
    %c0_22 = arith.constant 0 : index
    %41 = vector.load %arg8[%c0_21, %c0_22] : memref<1x128xf32, #tpu.memory_space<vmem>>, vector<1x128xf32>
    %c0_23 = arith.constant 0 : index
    %c0_24 = arith.constant 0 : index
    %42 = vector.load %arg9[%c0_23, %c0_24] : memref<1x128xf32, #tpu.memory_space<vmem>>, vector<1x128xf32>
    %cst_25 = arith.constant dense<0.000000e+00> : vector<16xf32>
    %43 = vector.multi_reduction <add>, %40, %cst_25 [1] : vector<16x128xf32> to vector<16xf32>
    %44 = vector.shape_cast %43 : vector<16xf32> to vector<16x1xf32>
    %45 = arith.mulf %40, %40 : vector<16x128xf32>
    %cst_26 = arith.constant dense<0.000000e+00> : vector<16xf32>
    %46 = vector.multi_reduction <add>, %45, %cst_26 [1] : vector<16x128xf32> to vector<16xf32>
    %47 = vector.shape_cast %46 : vector<16xf32> to vector<16x1xf32>
    %cst_27 = arith.constant 3.125000e-02 : f32
    %48 = vector.broadcast %cst_27 : f32 to vector<16x1xf32>
    %49 = arith.mulf %44, %48 : vector<16x1xf32>
    %cst_28 = arith.constant 3.125000e-02 : f32
    %50 = vector.broadcast %cst_28 : f32 to vector<16x1xf32>
    %51 = arith.mulf %47, %50 : vector<16x1xf32>
    %52 = arith.mulf %49, %49 : vector<16x1xf32>
    %53 = arith.subf %51, %52 : vector<16x1xf32>
    %cst_29 = arith.constant 0.000000e+00 : f32
    %54 = vector.broadcast %cst_29 : f32 to vector<16x1xf32>
    %55 = arith.maximumf %53, %54 : vector<16x1xf32>
    %56 = vector.broadcast %49 : vector<16x1xf32> to vector<16x128xf32>
    %57 = arith.subf %40, %56 : vector<16x128xf32>
    %cst_30 = arith.constant 9.99999974E-6 : f32
    %58 = vector.broadcast %cst_30 : f32 to vector<16x1xf32>
    %59 = arith.addf %55, %58 : vector<16x1xf32>
    %60 = math.rsqrt %59 : vector<16x1xf32>
    %61 = vector.broadcast %60 : vector<16x1xf32> to vector<16x128xf32>
    %62 = arith.mulf %57, %61 : vector<16x128xf32>
    %63 = vector.broadcast %41 : vector<1x128xf32> to vector<16x128xf32>
    %64 = arith.mulf %62, %63 : vector<16x128xf32>
    %65 = vector.broadcast %42 : vector<1x128xf32> to vector<16x128xf32>
    %66 = arith.addf %64, %65 : vector<16x128xf32>
    %cst_31 = arith.constant 0.000000e+00 : f32
    %67 = vector.broadcast %cst_31 : f32 to vector<16x128xf32>
    %68 = arith.maximumf %66, %67 : vector<16x128xf32>
    %c0_32 = arith.constant 0 : index
    %c0_33 = arith.constant 0 : index
    %69 = vector.load %arg10[%c0_32, %c0_33] : memref<128x128xbf16, #tpu.memory_space<vmem>>, vector<128x128xbf16>
    %c0_34 = arith.constant 0 : index
    %c0_35 = arith.constant 0 : index
    %70 = vector.load %arg11[%c0_34, %c0_35] : memref<1x128xf32, #tpu.memory_space<vmem>>, vector<1x128xf32>
    %71 = arith.truncf %68 : vector<16x128xf32> to vector<16x128xbf16>
    %cst_36 = arith.constant dense<0.000000e+00> : vector<16x128xf32>
    %72 = tpu.matmul %71, %69, %cst_36 {dimension_numbers = #tpu.dot_dimension_numbers<[1], [0], [0], [1], [0, 0, 1, 1], [], []>} : vector<16x128xbf16>, vector<128x128xbf16>, vector<16x128xf32> -> vector<16x128xf32>
    %73 = vector.broadcast %70 : vector<1x128xf32> to vector<16x128xf32>
    %74 = arith.addf %72, %73 : vector<16x128xf32>
    %cst_37 = arith.constant 0.000000e+00 : f32
    %75 = vector.broadcast %cst_37 : f32 to vector<16x128xf32>
    %76 = arith.maximumf %74, %75 : vector<16x128xf32>
    %c0_38 = arith.constant 0 : index
    %c0_39 = arith.constant 0 : index
    %77 = vector.load %arg12[%c0_38, %c0_39] : memref<16x128xf32, #tpu.memory_space<vmem>>, vector<16x128xf32>
    tpu.vector_store %arg12[%c0_38, %c0_39], %76 {strides = array<i32>} : memref<16x128xf32, #tpu.memory_space<vmem>>, vector<16x128xf32>,
    return
  }
  func.func @transform_0(%arg0: i32) -> (i32, i32) {
    %c0_i32 = arith.constant 0 : i32
    %c0_i32_0 = arith.constant 0 : i32
    return %arg0, %c0_i32 : i32, i32
  }
  func.func @transform_1(%arg0: i32) -> (i32, i32) {
    %c0_i32 = arith.constant 0 : i32
    %c0_i32_0 = arith.constant 0 : i32
    %c0_i32_1 = arith.constant 0 : i32
    return %c0_i32, %c0_i32_0 : i32, i32
  }
  func.func @transform_2(%arg0: i32) -> (i32, i32) {
    %c0_i32 = arith.constant 0 : i32
    %c0_i32_0 = arith.constant 0 : i32
    %c0_i32_1 = arith.constant 0 : i32
    return %c0_i32, %c0_i32_0 : i32, i32
  }
  func.func @transform_3(%arg0: i32) -> (i32, i32) {
    %c0_i32 = arith.constant 0 : i32
    %c0_i32_0 = arith.constant 0 : i32
    %c0_i32_1 = arith.constant 0 : i32
    return %c0_i32, %c0_i32_0 : i32, i32
  }
  func.func @transform_4(%arg0: i32) -> (i32, i32) {
    %c0_i32 = arith.constant 0 : i32
    %c0_i32_0 = arith.constant 0 : i32
    %c0_i32_1 = arith.constant 0 : i32
    return %c0_i32, %c0_i32_0 : i32, i32
  }
  func.func @transform_5(%arg0: i32) -> (i32, i32) {
    %c0_i32 = arith.constant 0 : i32
    %c0_i32_0 = arith.constant 0 : i32
    %c0_i32_1 = arith.constant 0 : i32
    return %c0_i32, %c0_i32_0 : i32, i32
  }
  func.func @transform_6(%arg0: i32) -> (i32, i32) {
    %c0_i32 = arith.constant 0 : i32
    %c0_i32_0 = arith.constant 0 : i32
    %c0_i32_1 = arith.constant 0 : i32
    return %c0_i32, %c0_i32_0 : i32, i32
  }
  func.func @transform_7(%arg0: i32) -> (i32, i32) {
    %c0_i32 = arith.constant 0 : i32
    %c0_i32_0 = arith.constant 0 : i32
    %c0_i32_1 = arith.constant 0 : i32
    return %c0_i32, %c0_i32_0 : i32, i32
  }
  func.func @transform_8(%arg0: i32) -> (i32, i32) {
    %c0_i32 = arith.constant 0 : i32
    %c0_i32_0 = arith.constant 0 : i32
    %c0_i32_1 = arith.constant 0 : i32
    return %c0_i32, %c0_i32_0 : i32, i32
  }
  func.func @transform_9(%arg0: i32) -> (i32, i32) {
    %c0_i32 = arith.constant 0 : i32
    %c0_i32_0 = arith.constant 0 : i32
    %c0_i32_1 = arith.constant 0 : i32
    return %c0_i32, %c0_i32_0 : i32, i32
  }
  func.func @transform_10(%arg0: i32) -> (i32, i32) {
    %c0_i32 = arith.constant 0 : i32
    %c0_i32_0 = arith.constant 0 : i32
    %c0_i32_1 = arith.constant 0 : i32
    return %c0_i32, %c0_i32_0 : i32, i32
  }
  func.func @transform_11(%arg0: i32) -> (i32, i32) {
    %c0_i32 = arith.constant 0 : i32
    %c0_i32_0 = arith.constant 0 : i32
    return %arg0, %c0_i32 : i32, i32
  }
}

</mosaic_0001>

<llo_original>
// kernel: tpu_custom_call.1
$region0: #{tpu_custom_call.1}
  #allocation0 [shape = 'u32[]', space=smem, size = 0x4, offset = 0x4, fixed_abs, tag = 'smem constant byte address 0x4 - core index']
  #allocation1 [shape = 'u32[144,128]{1,0:T(1,128)}', space=vmem, size = 0x12000, scoped, tag = 'internal scratch']
  %s0 = inlined_call_operand.hbm [shape: f32[16,128], index: 0, kind: input, shape index: {}]
  %s1 = inlined_call_operand.hbm [shape: bf16[128,128], index: 1, kind: input, shape index: {}]
  %s2 = inlined_call_operand.vmem [shape: f32[1,128], index: 2, kind: input, shape index: {}]
  %s3 = inlined_call_operand.vmem [shape: f32[1,128], index: 3, kind: input, shape index: {}]
  %s4 = inlined_call_operand.vmem [shape: f32[1,128], index: 4, kind: input, shape index: {}]
  %s5 = inlined_call_operand.hbm [shape: bf16[128,128], index: 5, kind: input, shape index: {}]
  %s6 = inlined_call_operand.vmem [shape: f32[1,128], index: 6, kind: input, shape index: {}]
  %s7 = inlined_call_operand.vmem [shape: f32[1,128], index: 7, kind: input, shape index: {}]
  %s8 = inlined_call_operand.vmem [shape: f32[1,128], index: 8, kind: input, shape index: {}]
  %s9 = inlined_call_operand.hbm [shape: bf16[128,128], index: 9, kind: input, shape index: {}]
  %s10 = inlined_call_operand.vmem [shape: f32[1,128], index: 10, kind: input, shape index: {}]
  %s11 = inlined_call_operand.hbm [shape: f32[16,128], index: 11, kind: output, shape index: {}]
  %s12 = sld [smem:[#allocation0]]
  $region70: #{tpu_custom_call.1} parent=0
    _
  %s14 = ssub.s32 1, %s12
  %s15 = scalar_select 0, %s14, %s12
  $region1: #{tpu_custom_call.1} parent=0
    #allocation2 [shape = 'u8[8192]{0}', space=vmem, size = 0x2000, scoped, tag = 'input window, operand 0, single buffered']
    #allocation3 [shape = 's32[1]{0}', space=sflag, size = 0x4, scoped, tag = 'scoped memory for tpu_custom_call.1']
    #allocation4 [shape = 's32[1]{0}', space=sflag, size = 0x4, scoped, tag = 'scoped memory for tpu_custom_call.1']
    #allocation5 [shape = 'u8[32768]{0}', space=vmem, size = 0x8000, scoped, tag = 'input window, operand 1, single buffered']
    #allocation6 [shape = 's32[1]{0}', space=sflag, size = 0x4, scoped, tag = 'scoped memory for tpu_custom_call.1']
    #allocation7 [shape = 'u8[32768]{0}', space=vmem, size = 0x8000, scoped, tag = 'input window, operand 5, single buffered']
    #allocation8 [shape = 'u8[32768]{0}', space=vmem, size = 0x8000, scoped, tag = 'input window, operand 9, single buffered']
    #allocation9 [shape = 's32[1]{0}', space=sflag, size = 0x4, scoped, tag = 'scoped memory for tpu_custom_call.1']
    #allocation10 [shape = 'u8[8192]{0}', space=vmem, size = 0x2000, scoped, tag = 'output window, operand 0, single buffered']
    %16 = vsyncpa [#allocation3], 0
    %17 = vsyncpa [#allocation6], 0
    %18 = vsyncpa [#allocation9], 0
    %19 = vsyncpa [#allocation4], 0
    // Predicated region
    $region2: #{tpu_custom_call.1} parent=1 // pred_check
      _
    $region3: #{tpu_custom_call.1} parent=1 // pred_check_branch
      %21 = sbr.rel (0) target = $region5
    $region4: #{tpu_custom_call.1} parent=1 // pred_region
      %s23 = ssub.s32 256, 256
      %24 = vsyncadd [#allocation3], %s23
      %s25 = sshll.u32 [#allocation2], 4
      %s26 = int_to_ptr.vmem [resolvable:$true] %s25
      %31 = dma.hbm_to_vmem [thread:$0]  %s0, 256, %s26, [#allocation3], 128, 128, 8
    $region5: #{tpu_custom_call.1} parent=1 // pred_fallthru
      _
    // Predicated region
    $region6: #{tpu_custom_call.1} parent=1 // pred_check
      _
    $region7: #{tpu_custom_call.1} parent=1 // pred_check_branch
      %33 = sbr.rel (0) target = $region9
    $region8: #{tpu_custom_call.1} parent=1 // pred_region
      %s35 = ssub.s32 1024, 1024
      %36 = vsyncadd [#allocation6], %s35
      %s37 = sshll.u32 [#allocation5], 4
      %s38 = int_to_ptr.vmem [resolvable:$true] %s37
      %43 = dma.hbm_to_vmem [thread:$0]  %s1, 1024, %s38, [#allocation6], 64, 64, 4
    $region9: #{tpu_custom_call.1} parent=1 // pred_fallthru
      _
    // Predicated region
    $region10: #{tpu_custom_call.1} parent=1 // pred_check
      _
    $region11: #{tpu_custom_call.1} parent=1 // pred_check_branch
      %45 = sbr.rel (0) target = $region13
    $region12: #{tpu_custom_call.1} parent=1 // pred_region
      _
    $region13: #{tpu_custom_call.1} parent=1 // pred_fallthru
      _
    // Predicated region
    $region14: #{tpu_custom_call.1} parent=1 // pred_check
      _
    $region15: #{tpu_custom_call.1} parent=1 // pred_check_branch
      %47 = sbr.rel (0) target = $region17
    $region16: #{tpu_custom_call.1} parent=1 // pred_region
      _
    $region17: #{tpu_custom_call.1} parent=1 // pred_fallthru
      _
    // Predicated region
    $region18: #{tpu_custom_call.1} parent=1 // pred_check
      _
    $region19: #{tpu_custom_call.1} parent=1 // pred_check_branch
      %49 = sbr.rel (0) target = $region21
    $region20: #{tpu_custom_call.1} parent=1 // pred_region
      _
    $region21: #{tpu_custom_call.1} parent=1 // pred_fallthru
      _
    // Predicated region
    $region22: #{tpu_custom_call.1} parent=1 // pred_check
      _
    $region23: #{tpu_custom_call.1} parent=1 // pred_check_branch
      %51 = sbr.rel (0) target = $region25
    $region24: #{tpu_custom_call.1} parent=1 // pred_region
      %s53 = ssub.s32 1024, 1024
      %54 = vsyncadd [#allocation6], %s53
      %s55 = sshll.u32 [#allocation7], 4
      %s56 = int_to_ptr.vmem [resolvable:$true] %s55
      %61 = dma.hbm_to_vmem [thread:$0]  %s5, 1024, %s56, [#allocation6], 64, 64, 4
    $region25: #{tpu_custom_call.1} parent=1 // pred_fallthru
      _
    // Predicated region
    $region26: #{tpu_custom_call.1} parent=1 // pred_check
      _
    $region27: #{tpu_custom_call.1} parent=1 // pred_check_branch
      %63 = sbr.rel (0) target = $region29
    $region28: #{tpu_custom_call.1} parent=1 // pred_region
      _
    $region29: #{tpu_custom_call.1} parent=1 // pred_fallthru
      _
    // Predicated region
    $region30: #{tpu_custom_call.1} parent=1 // pred_check
      _
    $region31: #{tpu_custom_call.1} parent=1 // pred_check_branch
      %65 = sbr.rel (0) target = $region33
    $region32: #{tpu_custom_call.1} parent=1 // pred_region
      _
    $region33: #{tpu_custom_call.1} parent=1 // pred_fallthru
      _
    // Predicated region
    $region34: #{tpu_custom_call.1} parent=1 // pred_check
      _
    $region35: #{tpu_custom_call.1} parent=1 // pred_check_branch
      %67 = sbr.rel (0) target = $region37
    $region36: #{tpu_custom_call.1} parent=1 // pred_region
      _
    $region37: #{tpu_custom_call.1} parent=1 // pred_fallthru
      _
    // Predicated region
    $region38: #{tpu_custom_call.1} parent=1 // pred_check
      _
    $region39: #{tpu_custom_call.1} parent=1 // pred_check_branch
      %69 = sbr.rel (0) target = $region41
    $region40: #{tpu_custom_call.1} parent=1 // pred_region
      %s71 = ssub.s32 1024, 1024
      %72 = vsyncadd [#allocation9], %s71
      %s73 = sshll.u32 [#allocation8], 4
      %s74 = int_to_ptr.vmem [resolvable:$true] %s73
      %79 = dma.hbm_to_vmem [thread:$0]  %s9, 1024, %s74, [#allocation9], 64, 64, 4
    $region41: #{tpu_custom_call.1} parent=1 // pred_fallthru
      _
    // Predicated region
    $region42: #{tpu_custom_call.1} parent=1 // pred_check
      _
    $region43: #{tpu_custom_call.1} parent=1 // pred_check_branch
      %81 = sbr.rel (0) target = $region45
    $region44: #{tpu_custom_call.1} parent=1 // pred_region
      _
    $region45: #{tpu_custom_call.1} parent=1 // pred_fallthru
      _
    // Predicated region
    $region46: #{tpu_custom_call.1} parent=1 // pred_check
      _
    $region47: #{tpu_custom_call.1} parent=1 // pred_check_branch
      %83 = sbr.rel (0) target = $region49
    $region48: #{tpu_custom_call.1} parent=1 // pred_region
      %84 = dma.done [#allocation3], 256
    $region49: #{tpu_custom_call.1} parent=1 // pred_fallthru
      _
    // Predicated region
    $region50: #{tpu_custom_call.1} parent=1 // pred_check
      _
    $region51: #{tpu_custom_call.1} parent=1 // pred_check_branch
      %86 = sbr.rel (0) target = $region53
    $region52: #{tpu_custom_call.1} parent=1 // pred_region
      %87 = dma.done [#allocation6], 1024
    $region53: #{tpu_custom_call.1} parent=1 // pred_fallthru
      _
    // Predicated region
    $region54: #{tpu_custom_call.1} parent=1 // pred_check
      _
    $region55: #{tpu_custom_call.1} parent=1 // pred_check_branch
      %89 = sbr.rel (0) target = $region57
    $region56: #{tpu_custom_call.1} parent=1 // pred_region
      %90 = dma.done [#allocation6], 1024
    $region57: #{tpu_custom_call.1} parent=1 // pred_fallthru
      _
    // Predicated region
    $region58: #{tpu_custom_call.1} parent=1 // pred_check
      _
    $region59: #{tpu_custom_call.1} parent=1 // pred_check_branch
      %92 = sbr.rel (0) target = $region61
    $region60: #{tpu_custom_call.1} parent=1 // pred_region
      %93 = dma.done [#allocation9], 1024
    $region61: #{tpu_custom_call.1} parent=1 // pred_fallthru
      _
    %v95 = vld [vmem:[#allocation2] sm:$0xff]
    %v96 = vld [vmem:[#allocation2 + $0x8] sm:$0xff]
    %v97 = vld [vmem:[#allocation5] sm:$0xf]
    %v98 = vld [vmem:[#allocation5 + $0x4] sm:$0xf]
    %v99 = vld [vmem:[#allocation5 + $0x8] sm:$0xf]
    %v100 = vld [vmem:[#allocation5 + $0xc] sm:$0xf]
    %v101 = vld [vmem:[#allocation5 + $0x10] sm:$0xf]
    %v102 = vld [vmem:[#allocation5 + $0x14] sm:$0xf]
    %v103 = vld [vmem:[#allocation5 + $0x18] sm:$0xf]
    %v104 = vld [vmem:[#allocation5 + $0x1c] sm:$0xf]
    %v105 = vld [vmem:[#allocation5 + $0x20] sm:$0xf]
    %v106 = vld [vmem:[#allocation5 + $0x24] sm:$0xf]
    %v107 = vld [vmem:[#allocation5 + $0x28] sm:$0xf]
    %v108 = vld [vmem:[#allocation5 + $0x2c] sm:$0xf]
    %v109 = vld [vmem:[#allocation5 + $0x30] sm:$0xf]
    %v110 = vld [vmem:[#allocation5 + $0x34] sm:$0xf]
    %v111 = vld [vmem:[#allocation5 + $0x38] sm:$0xf]
    %v112 = vld [vmem:[#allocation5 + $0x3c] sm:$0xf]
    %v113 = vld [vmem:[%s2] sm:$0x1]
    %v114 = vpack.c.bf16 %v96, %v95
    %v116 = vlaneseq
    %v117 = vshrl.u32 %v116, 7
    %v118 = vsub.s32 0, %v117
    %v119 = vrot.slane %v113, %v118
    %v137 = vunpack.c.l.b16 %v97
    %v138 = vunpack.c.l.b16 %v98
    %v139 = vunpack.c.l.b16 %v99
    %v140 = vunpack.c.l.b16 %v100
    %v141 = vunpack.c.l.b16 %v101
    %v142 = vunpack.c.l.b16 %v102
    %v143 = vunpack.c.l.b16 %v103
    %v144 = vunpack.c.l.b16 %v104
    %v145 = vunpack.c.l.b16 %v105
    %v146 = vunpack.c.l.b16 %v106
    %v147 = vunpack.c.l.b16 %v107
    %v148 = vunpack.c.l.b16 %v108
    %v149 = vunpack.c.l.b16 %v109
    %v150 = vunpack.c.l.b16 %v110
    %v151 = vunpack.c.l.b16 %v111
    %v152 = vunpack.c.l.b16 %v112
    %v153 = vpack.c.b16 %v138, %v137
    %v154 = vpack.c.b16 %v140, %v139
    %v155 = vpack.c.b16 %v142, %v141
    %v156 = vpack.c.b16 %v144, %v143
    %v157 = vpack.c.b16 %v146, %v145
    %v158 = vpack.c.b16 %v148, %v147
    %v159 = vpack.c.b16 %v150, %v149
    %v160 = vpack.c.b16 %v152, %v151
    %169 = vmatprep.subr.bf16.mxu0 0
    %170 = vmatpush1.bf16.msra.mxu0 %v160
    %171 = vmatprep.subr.bf16.mxu0 0
    %172 = vmatpush1.bf16.msra.mxu0 %v159
    %173 = vmatprep.subr.bf16.mxu0 0
    %174 = vmatpush1.bf16.msra.mxu0 %v158
    %175 = vmatprep.subr.bf16.mxu0 0
    %176 = vmatpush1.bf16.msra.mxu0 %v157
    %177 = vmatprep.subr.bf16.mxu0 0
    %178 = vmatpush1.bf16.msra.mxu0 %v156
    %179 = vmatprep.subr.bf16.mxu0 0
    %180 = vmatpush1.bf16.msra.mxu0 %v155
    %181 = vmatprep.subr.bf16.mxu0 0
    %182 = vmatpush1.bf16.msra.mxu0 %v154
    %183 = vmatprep.subr.bf16.mxu0 0
    %184 = vmatpush1.bf16.msra.mxu0 %v153
    %185 = vmatprep.subr.bf16.mxu0 0
    %186 = vmatpush2.bf16.msra.mxu0 0
    %187 = vmatprep.subr.bf16.mxu0 0
    %188 = vmatpush2.bf16.msra.mxu0 0
    %189 = vmatprep.subr.bf16.mxu0 0
    %190 = vmatpush2.bf16.msra.mxu0 0
    %191 = vmatprep.subr.bf16.mxu0 0
    %192 = vmatpush2.bf16.msra.mxu0 0
    %193 = vmatprep.subr.bf16.mxu0 0
    %194 = vmatpush2.bf16.msra.mxu0 0
    %195 = vmatprep.subr.bf16.mxu0 0
    %196 = vmatpush2.bf16.msra.mxu0 0
    %197 = vmatprep.subr.bf16.mxu0 0
    %198 = vmatpush2.bf16.msra.mxu0 0
    %199 = vmatprep.subr.bf16.mxu0 0
    %200 = vmatpush2.bf16.msra.mxu0 0
    %201 = vmatprep.mubr.bf16.mxu0 0
    %202 = vmatmul.mubr.bf16.gmra.mxu0 %v114
    %v203 = vpop.f32.mrf.mxu0
    %v204 = vadd.f32 %v119, %v203
    %v205 = vpop.f32.mrf.mxu0
    %v206 = vpop.f32.mrf.mxu0
    %v207 = vadd.f32 %v119, %v206
    %v208 = vpop.f32.mrf.mxu0
    %209 = vdwg.mxu0
    %v210 = vld [vmem:[%s3] sm:$0x1]
    %v211 = vld [vmem:[%s4] sm:$0x1]
    %212 = vadd.xlane.f32.xlu0 %v204
    %v213 = vpop.xlane.xlu0 %212
    %214 = vadd.xlane.f32.xlu0 %v207
    %v215 = vpop.xlane.xlu0 %214
    %v216 = vmul.f32 %v204, %v204
    %v217 = vmul.f32 %v207, %v207
    %218 = vadd.xlane.f32.xlu0 %v216
    %v219 = vpop.xlane.xlu0 %218
    %220 = vadd.xlane.f32.xlu0 %v217
    %v221 = vpop.xlane.xlu0 %220
    %v222 = vmul.f32 %v213, 0.015625
    %v223 = vmul.f32 %v215, 0.015625
    %v224 = vmul.f32 %v219, 0.015625
    %v225 = vmul.f32 %v221, 0.015625
    %v226 = vmul.f32 %v222, %v222
    %v227 = vmul.f32 %v223, %v223
    %v228 = vsub.f32 %v224, %v226
    %v229 = vsub.f32 %v225, %v227
    %v230 = vmax.f32 %v228, 0.0
    %v231 = vmax.f32 %v229, 0.0
    %v232 = vsub.f32 %v204, %v222
    %v233 = vsub.f32 %v207, %v223
    %v234 = vadd.f32 %v230, 1e-05
    %v235 = vadd.f32 %v231, 1e-05
    %v236 = vrsqrt.pop %v234
    %v237 = vrsqrt.pop %v235
    %v238 = vmul.f32 %v232, %v236
    %v239 = vmul.f32 %v233, %v237
    %v241 = vlaneseq
    %v242 = vshrl.u32 %v241, 7
    %v243 = vsub.s32 0, %v242
    %v244 = vrot.slane %v210, %v243
    %v246 = vmul.f32 %v238, %v244
    %v247 = vmul.f32 %v239, %v244
    %v249 = vlaneseq
    %v250 = vshrl.u32 %v249, 7
    %v251 = vsub.s32 0, %v250
    %v252 = vrot.slane %v211, %v251
    %v254 = vadd.f32 %v246, %v252
    %v255 = vadd.f32 %v247, %v252
    %v256 = vmax.f32 %v254, 0.0
    %v257 = vmax.f32 %v255, 0.0
    %v258 = vld [vmem:[#allocation7] sm:$0xf]
    %v259 = vld [vmem:[#allocation7 + $0x4] sm:$0xf]
    %v260 = vld [vmem:[#allocation7 + $0x8] sm:$0xf]
    %v261 = vld [vmem:[#allocation7 + $0xc] sm:$0xf]
    %v262 = vld [vmem:[#allocation7 + $0x10] sm:$0xf]
    %v263 = vld [vmem:[#allocation7 + $0x14] sm:$0xf]
    %v264 = vld [vmem:[#allocation7 + $0x18] sm:$0xf]
    %v265 = vld [vmem:[#allocation7 + $0x1c] sm:$0xf]
    %v266 = vld [vmem:[#allocation7 + $0x20] sm:$0xf]
    %v267 = vld [vmem:[#allocation7 + $0x24] sm:$0xf]
    %v268 = vld [vmem:[#allocation7 + $0x28] sm:$0xf]
    %v269 = vld [vmem:[#allocation7 + $0x2c] sm:$0xf]
    %v270 = vld [vmem:[#allocation7 + $0x30] sm:$0xf]
    %v271 = vld [vmem:[#allocation7 + $0x34] sm:$0xf]
    %v272 = vld [vmem:[#allocation7 + $0x38] sm:$0xf]
    %v273 = vld [vmem:[#allocation7 + $0x3c] sm:$0xf]
    %v274 = vld [vmem:[%s6] sm:$0x1]
    %v275 = vpack.c.bf16 %v257, %v256
    %v277 = vlaneseq
    %v278 = vshrl.u32 %v277, 7
    %v279 = vsub.s32 0, %v278
    %v280 = vrot.slane %v274, %v279
    %v298 = vunpack.c.l.b16 %v258
    %v299 = vunpack.c.l.b16 %v259
    %v300 = vunpack.c.l.b16 %v260
    %v301 = vunpack.c.l.b16 %v261
    %v302 = vunpack.c.l.b16 %v262
    %v303 = vunpack.c.l.b16 %v263
    %v304 = vunpack.c.l.b16 %v264
    %v305 = vunpack.c.l.b16 %v265
    %v306 = vunpack.c.l.b16 %v266
    %v307 = vunpack.c.l.b16 %v267
    %v308 = vunpack.c.l.b16 %v268
    %v309 = vunpack.c.l.b16 %v269
    %v310 = vunpack.c.l.b16 %v270
    %v311 = vunpack.c.l.b16 %v271
    %v312 = vunpack.c.l.b16 %v272
    %v313 = vunpack.c.l.b16 %v273
    %v314 = vpack.c.b16 %v299, %v298
    %v315 = vpack.c.b16 %v301, %v300
    %v316 = vpack.c.b16 %v303, %v302
    %v317 = vpack.c.b16 %v305, %v304
    %v318 = vpack.c.b16 %v307, %v306
    %v319 = vpack.c.b16 %v309, %v308
    %v320 = vpack.c.b16 %v311, %v310
    %v321 = vpack.c.b16 %v313, %v312
    %330 = vmatprep.subr.bf16.mxu0 0
    %331 = vmatpush1.bf16.msra.mxu0 %v321
    %332 = vmatprep.subr.bf16.mxu0 0
    %333 = vmatpush1.bf16.msra.mxu0 %v320
    %334 = vmatprep.subr.bf16.mxu0 0
    %335 = vmatpush1.bf16.msra.mxu0 %v319
    %336 = vmatprep.subr.bf16.mxu0 0
    %337 = vmatpush1.bf16.msra.mxu0 %v318
    %338 = vmatprep.subr.bf16.mxu0 0
    %339 = vmatpush1.bf16.msra.mxu0 %v317
    %340 = vmatprep.subr.bf16.mxu0 0
    %341 = vmatpush1.bf16.msra.mxu0 %v316
    %342 = vmatprep.subr.bf16.mxu0 0
    %343 = vmatpush1.bf16.msra.mxu0 %v315
    %344 = vmatprep.subr.bf16.mxu0 0
    %345 = vmatpush1.bf16.msra.mxu0 %v314
    %346 = vmatprep.subr.bf16.mxu0 0
    %347 = vmatpush2.bf16.msra.mxu0 0
    %348 = vmatprep.subr.bf16.mxu0 0
    %349 = vmatpush2.bf16.msra.mxu0 0
    %350 = vmatprep.subr.bf16.mxu0 0
    %351 = vmatpush2.bf16.msra.mxu0 0
    %352 = vmatprep.subr.bf16.mxu0 0
    %353 = vmatpush2.bf16.msra.mxu0 0
    %354 = vmatprep.subr.bf16.mxu0 0
    %355 = vmatpush2.bf16.msra.mxu0 0
    %356 = vmatprep.subr.bf16.mxu0 0
    %357 = vmatpush2.bf16.msra.mxu0 0
    %358 = vmatprep.subr.bf16.mxu0 0
    %359 = vmatpush2.bf16.msra.mxu0 0
    %360 = vmatprep.subr.bf16.mxu0 0
    %361 = vmatpush2.bf16.msra.mxu0 0
    %362 = vmatprep.mubr.bf16.mxu0 0
    %363 = vmatmul.mubr.bf16.gmra.mxu0 %v275
    %v364 = vpop.f32.mrf.mxu0
    %v365 = vadd.f32 %v280, %v364
    %v366 = vpop.f32.mrf.mxu0
    %v367 = vpop.f32.mrf.mxu0
    %v368 = vadd.f32 %v280, %v367
    %v369 = vpop.f32.mrf.mxu0
    %370 = vdwg.mxu0
    %v371 = vld [vmem:[%s7] sm:$0x1]
    %v372 = vld [vmem:[%s8] sm:$0x1]
    %373 = vadd.xlane.f32.xlu0 %v365
    %v374 = vpop.xlane.xlu0 %373
    %375 = vadd.xlane.f32.xlu0 %v368
    %v376 = vpop.xlane.xlu0 %375
    %v377 = vmul.f32 %v365, %v365
    %v378 = vmul.f32 %v368, %v368
    %379 = vadd.xlane.f32.xlu0 %v377
    %v380 = vpop.xlane.xlu0 %379
    %381 = vadd.xlane.f32.xlu0 %v378
    %v382 = vpop.xlane.xlu0 %381
    %v383 = vmul.f32 %v374, 0.03125
    %v384 = vmul.f32 %v376, 0.03125
    %v385 = vmul.f32 %v380, 0.03125
    %v386 = vmul.f32 %v382, 0.03125
    %v387 = vmul.f32 %v383, %v383
    %v388 = vmul.f32 %v384, %v384
    %v389 = vsub.f32 %v385, %v387
    %v390 = vsub.f32 %v386, %v388
    %v391 = vmax.f32 %v389, 0.0
    %v392 = vmax.f32 %v390, 0.0
    %v393 = vsub.f32 %v365, %v383
    %v394 = vsub.f32 %v368, %v384
    %v395 = vadd.f32 %v391, 1e-05
    %v396 = vadd.f32 %v392, 1e-05
    %v397 = vrsqrt.pop %v395
    %v398 = vrsqrt.pop %v396
    %v399 = vmul.f32 %v393, %v397
    %v400 = vmul.f32 %v394, %v398
    %v402 = vlaneseq
    %v403 = vshrl.u32 %v402, 7
    %v404 = vsub.s32 0, %v403
    %v405 = vrot.slane %v371, %v404
    %v407 = vmul.f32 %v399, %v405
    %v408 = vmul.f32 %v400, %v405
    %v410 = vlaneseq
    %v411 = vshrl.u32 %v410, 7
    %v412 = vsub.s32 0, %v411
    %v413 = vrot.slane %v372, %v412
    %v415 = vadd.f32 %v407, %v413
    %v416 = vadd.f32 %v408, %v413
    %v417 = vmax.f32 %v415, 0.0
    %v418 = vmax.f32 %v416, 0.0
    %v419 = vld [vmem:[#allocation8] sm:$0xf]
    %v420 = vld [vmem:[#allocation8 + $0x4] sm:$0xf]
    %v421 = vld [vmem:[#allocation8 + $0x8] sm:$0xf]
    %v422 = vld [vmem:[#allocation8 + $0xc] sm:$0xf]
    %v423 = vld [vmem:[#allocation8 + $0x10] sm:$0xf]
    %v424 = vld [vmem:[#allocation8 + $0x14] sm:$0xf]
    %v425 = vld [vmem:[#allocation8 + $0x18] sm:$0xf]
    %v426 = vld [vmem:[#allocation8 + $0x1c] sm:$0xf]
    %v427 = vld [vmem:[#allocation8 + $0x20] sm:$0xf]
    %v428 = vld [vmem:[#allocation8 + $0x24] sm:$0xf]
    %v429 = vld [vmem:[#allocation8 + $0x28] sm:$0xf]
    %v430 = vld [vmem:[#allocation8 + $0x2c] sm:$0xf]
    %v431 = vld [vmem:[#allocation8 + $0x30] sm:$0xf]
    %v432 = vld [vmem:[#allocation8 + $0x34] sm:$0xf]
    %v433 = vld [vmem:[#allocation8 + $0x38] sm:$0xf]
    %v434 = vld [vmem:[#allocation8 + $0x3c] sm:$0xf]
    %v435 = vld [vmem:[%s10] sm:$0x1]
    %v436 = vpack.c.bf16 %v418, %v417
    %v438 = vlaneseq
    %v439 = vshrl.u32 %v438, 7
    %v440 = vsub.s32 0, %v439
    %v441 = vrot.slane %v435, %v440
    %v459 = vunpack.c.l.b16 %v419
    %v460 = vunpack.c.l.b16 %v420
    %v461 = vunpack.c.l.b16 %v421
    %v462 = vunpack.c.l.b16 %v422
    %v463 = vunpack.c.l.b16 %v423
    %v464 = vunpack.c.l.b16 %v424
    %v465 = vunpack.c.l.b16 %v425
    %v466 = vunpack.c.l.b16 %v426
    %v467 = vunpack.c.l.b16 %v427
    %v468 = vunpack.c.l.b16 %v428
    %v469 = vunpack.c.l.b16 %v429
    %v470 = vunpack.c.l.b16 %v430
    %v471 = vunpack.c.l.b16 %v431
    %v472 = vunpack.c.l.b16 %v432
    %v473 = vunpack.c.l.b16 %v433
    %v474 = vunpack.c.l.b16 %v434
    %v475 = vpack.c.b16 %v460, %v459
    %v476 = vpack.c.b16 %v462, %v461
    %v477 = vpack.c.b16 %v464, %v463
    %v478 = vpack.c.b16 %v466, %v465
    %v479 = vpack.c.b16 %v468, %v467
    %v480 = vpack.c.b16 %v470, %v469
    %v481 = vpack.c.b16 %v472, %v471
    %v482 = vpack.c.b16 %v474, %v473
    %491 = vmatprep.subr.bf16.mxu0 0
    %492 = vmatpush1.bf16.msra.mxu0 %v482
    %493 = vmatprep.subr.bf16.mxu0 0
    %494 = vmatpush1.bf16.msra.mxu0 %v481
    %495 = vmatprep.subr.bf16.mxu0 0
    %496 = vmatpush1.bf16.msra.mxu0 %v480
    %497 = vmatprep.subr.bf16.mxu0 0
    %498 = vmatpush1.bf16.msra.mxu0 %v479
    %499 = vmatprep.subr.bf16.mxu0 0
    %500 = vmatpush1.bf16.msra.mxu0 %v478
    %501 = vmatprep.subr.bf16.mxu0 0
    %502 = vmatpush1.bf16.msra.mxu0 %v477
    %503 = vmatprep.subr.bf16.mxu0 0
    %504 = vmatpush1.bf16.msra.mxu0 %v476
    %505 = vmatprep.subr.bf16.mxu0 0
    %506 = vmatpush1.bf16.msra.mxu0 %v475
    %507 = vmatprep.subr.bf16.mxu0 0
    %508 = vmatpush2.bf16.msra.mxu0 0
    %509 = vmatprep.subr.bf16.mxu0 0
    %510 = vmatpush2.bf16.msra.mxu0 0
    %511 = vmatprep.subr.bf16.mxu0 0
    %512 = vmatpush2.bf16.msra.mxu0 0
    %513 = vmatprep.subr.bf16.mxu0 0
    %514 = vmatpush2.bf16.msra.mxu0 0
    %515 = vmatprep.subr.bf16.mxu0 0
    %516 = vmatpush2.bf16.msra.mxu0 0
    %517 = vmatprep.subr.bf16.mxu0 0
    %518 = vmatpush2.bf16.msra.mxu0 0
    %519 = vmatprep.subr.bf16.mxu0 0
    %520 = vmatpush2.bf16.msra.mxu0 0
    %521 = vmatprep.subr.bf16.mxu0 0
    %522 = vmatpush2.bf16.msra.mxu0 0
    %523 = vmatprep.mubr.bf16.mxu0 0
    %524 = vmatmul.mubr.bf16.gmra.mxu0 %v436
    %v525 = vpop.f32.mrf.mxu0
    %v526 = vadd.f32 %v441, %v525
    %v527 = vpop.f32.mrf.mxu0
    %v528 = vpop.f32.mrf.mxu0
    %v529 = vadd.f32 %v441, %v528
    %v530 = vpop.f32.mrf.mxu0
    %531 = vdwg.mxu0
    %v532 = vmax.f32 %v526, 0.0
    %v533 = vmax.f32 %v529, 0.0
    %534 = vst [vmem:[#allocation10] sm:$0xff] %v532
    %535 = vst [vmem:[#allocation10 + $0x8] sm:$0xff] %v533
    // Predicated region
    $region62: #{tpu_custom_call.1} parent=1 // pred_check
      _
    $region63: #{tpu_custom_call.1} parent=1 // pred_check_branch
      %537 = sbr.rel (0) target = $region65
    $region64: #{tpu_custom_call.1} parent=1 // pred_region
      %s539 = ssub.s32 256, 256
      %540 = vsyncadd [#allocation4], %s539
      %s541 = sshll.u32 [#allocation10], 4
      %s542 = int_to_ptr.vmem [resolvable:$true] %s541
      %547 = dma.vmem_to_hbm [thread:$0]  %s542, 256, %s11, [#allocation4], 128, 128, 8
    $region65: #{tpu_custom_call.1} parent=1 // pred_fallthru
      _
    // Predicated region
    $region66: #{tpu_custom_call.1} parent=1 // pred_check
      _
    $region67: #{tpu_custom_call.1} parent=1 // pred_check_branch
      %549 = sbr.rel (0) target = $region69
    $region68: #{tpu_custom_call.1} parent=1 // pred_region
      %550 = dma.done [#allocation4], 256
    $region69: #{tpu_custom_call.1} parent=1 // pred_fallthru
      _
    %551 = vsyncpa [#allocation3], 1
    %552 = vsyncpa [#allocation6], 1
    %553 = vsyncpa [#allocation9], 1
    %554 = vsyncpa [#allocation4], 1

</llo_original>
